<compile_context>
chip_gen: v6e
topology: v6e:2x2x1
jax: 0.10.0
libtpu: 0.0.40
codegen_flags: <defaults>
</compile_context>

<pallas_src>
import functools
import math

import jax
import jax.numpy as jnp
from jax.experimental import pallas as pl
from jax.experimental.pallas import tpu as pltpu


# ----------------------------------------------------------------------------
# fused kernel
# ----------------------------------------------------------------------------
def _ln(v, w, b, eps):
    """Row-wise LayerNorm, PyTorch semantics (biased variance, eps inside rsqrt)."""
    m = jnp.mean(v, axis=-1, keepdims=True)
    c = v - m
    var = jnp.mean(c * c, axis=-1, keepdims=True)
    return c * jax.lax.rsqrt(var + eps) * w + b


def _slot_attention_kernel(x_ref, noise_ref, mu_ref, logsig_ref,
                           niw_ref, nib_ref, nsw_ref, nsb_ref, out_ref,
                           *, iters, scale, eps, ln_eps):
    # norm_input(inputs) — computed once, reused by every iteration.
    x = _ln(x_ref[0].astype(jnp.float32), niw_ref[...], nib_ref[...], ln_eps)   # (N, D)

    # slots = mu + exp(logsigma) * noise  (fused slot init)
    mu = mu_ref[...].astype(jnp.float32)                   # (1, D)
    sigma = jnp.exp(logsig_ref[...].astype(jnp.float32))   # (1, D)
    slots = mu + sigma * noise_ref[0].astype(jnp.float32)  # (S, D)

    for _ in range(iters):                                 # iters is small & static
        s = _ln(slots, nsw_ref[...], nsb_ref[...], ln_eps)                    # (S, D)
        s_sq = jnp.sum(s * s, axis=-1, keepdims=True)                         # (S, 1)
        cross = jax.lax.dot_general(s, x, (((1,), (1,)), ((), ())),
                                    preferred_element_type=jnp.float32)       # (S, N)
        # squared cdist with the |x_j|^2 term dropped: it is constant along the
        # softmax axis (slots, axis=0) so the softmax below is exactly unchanged.
        dots = (s_sq - 2.0 * cross) * scale                                   # (S, N)

        # softmax over the slot axis (axis=0), numerically stabilised
        col_max = jnp.max(dots, axis=0, keepdims=True)                        # (1, N)
        e = jnp.exp(dots - col_max)                                           # (S, N)
        attn = e * pl.reciprocal(jnp.sum(e, axis=0, keepdims=True),
                                 approx=True) + eps
        # re-normalize per slot over the input axis
        attn = attn * pl.reciprocal(jnp.sum(attn, axis=-1, keepdims=True),
                                    approx=True)
        # updates[i, :] = sum_j attn[i, j] * x[j, :]
        slots = jnp.dot(attn, x, preferred_element_type=jnp.float32)          # (S, D)

    out_ref[0] = slots.astype(out_ref.dtype)


def slot_attention_forward(inputs, noise, params, *, iters=3, eps=1e-8, ln_eps=1e-5):
    """inputs: (B, N, D); noise: (B, S, D) standard normal; returns slots (B, S, D)."""
    B, N, D = inputs.shape
    S = noise.shape[1]
    kernel = functools.partial(_slot_attention_kernel, iters=iters,
                               scale=D ** -0.5, eps=eps, ln_eps=ln_eps)
    batched = lambda i: (i, 0, 0)
    shared = lambda i: (0, 0)
    return pl.pallas_call(
        kernel,
        out_shape=jax.ShapeDtypeStruct((B, S, D), jnp.float32),
        grid=(B,),
        in_specs=[
            pl.BlockSpec((1, N, D), batched),    # inputs
            pl.BlockSpec((1, S, D), batched),    # slot noise
            pl.BlockSpec((1, D), shared),        # slots_mu
            pl.BlockSpec((1, D), shared),        # slots_logsigma
            pl.BlockSpec((1, D), shared),        # norm_input.weight
            pl.BlockSpec((1, D), shared),        # norm_input.bias
            pl.BlockSpec((1, D), shared),        # norm_slots.weight
            pl.BlockSpec((1, D), shared),        # norm_slots.bias
        ],
        out_specs=pl.BlockSpec((1, S, D), batched),
        compiler_params=pltpu.CompilerParams(dimension_semantics=("parallel",)),
    )(inputs, noise,
      params["slots_mu"], params["slots_logsigma"],
      params["norm_input_w"], params["norm_input_b"],
      params["norm_slots_w"], params["norm_slots_b"])


# ----------------------------------------------------------------------------
# pure-JAX reference (straightforward cdist^2, for in-script validation)
# ----------------------------------------------------------------------------
def slot_attention_ref(inputs, noise, params, *, iters=3, eps=1e-8, ln_eps=1e-5):
    D = inputs.shape[-1]
    scale = D ** -0.5

    def ln(v, w, b):
        m = jnp.mean(v, axis=-1, keepdims=True)
        c = v - m
        var = jnp.mean(c * c, axis=-1, keepdims=True)
        return c * jax.lax.rsqrt(var + ln_eps) * w + b

    x = ln(inputs, params["norm_input_w"], params["norm_input_b"])
    slots = params["slots_mu"][None] + jnp.exp(params["slots_logsigma"])[None] * noise
    for _ in range(iters):
        s = ln(slots, params["norm_slots_w"], params["norm_slots_b"])
        d2 = jnp.sum((s[:, :, None, :] - x[:, None, :, :]) ** 2, axis=-1)  # (B,S,N)
        attn = jax.nn.softmax(d2 * scale, axis=1) + eps
        attn = attn / jnp.sum(attn, axis=-1, keepdims=True)
        slots = jnp.einsum("bjd,bij->bid", x, attn)
    return slots


# ----------------------------------------------------------------------------
if __name__ == "__main__":
    B, N, D, S = 2, 16, 128, 8          # batch, tokens, dim (lane-dense), slots
    ITERS, EPS = 3, 1e-8

    key = jax.random.PRNGKey(0)
    k_in, k_noise, k_mu, k_ls = jax.random.split(key, 4)
    inputs = jax.random.normal(k_in, (B, N, D), jnp.float32)
    noise = jax.random.normal(k_noise, (B, S, D), jnp.float32)

    # Parameters used by forward(): slots_mu ~ N(0,1); slots_logsigma xavier_uniform
    # on a (1,1,D) tensor (fan_in = fan_out = D); LayerNorms at default init.
    bound = math.sqrt(3.0 / D)
    params = dict(
        slots_mu=jax.random.normal(k_mu, (1, D), jnp.float32),
        slots_logsigma=jax.random.uniform(k_ls, (1, D), jnp.float32, -bound, bound),
        norm_input_w=jnp.ones((1, D), jnp.float32),
        norm_input_b=jnp.zeros((1, D), jnp.float32),
        norm_slots_w=jnp.ones((1, D), jnp.float32),
        norm_slots_b=jnp.zeros((1, D), jnp.float32),
    )

    out = slot_attention_forward(inputs, noise, params, iters=ITERS, eps=EPS)
    jax.block_until_ready(out)

    ref = slot_attention_ref(inputs, noise, params, iters=ITERS, eps=EPS)
    assert out.shape == (B, S, D)
    assert bool(jnp.isfinite(out).all())
    assert bool(jnp.allclose(out, ref, rtol=2e-2, atol=2e-2)), "mismatch vs JAX reference"
    print("KERNEL_OK")
</pallas_src>

<mosaic_0001>
module attributes {stable_mosaic.version = 11 : i64} {
  func.func @_slot_attention_kernel(%arg0: i32, %arg1: memref<1x16x128xf32, #tpu.memory_space<vmem>>, %arg2: memref<1x8x128xf32, #tpu.memory_space<vmem>>, %arg3: memref<1x128xf32, #tpu.memory_space<vmem>>, %arg4: memref<1x128xf32, #tpu.memory_space<vmem>>, %arg5: memref<1x128xf32, #tpu.memory_space<vmem>>, %arg6: memref<1x128xf32, #tpu.memory_space<vmem>>, %arg7: memref<1x128xf32, #tpu.memory_space<vmem>>, %arg8: memref<1x128xf32, #tpu.memory_space<vmem>>, %arg9: memref<1x8x128xf32, #tpu.memory_space<vmem>>) attributes {dimension_semantics = [#tpu.dimension_semantics<parallel>], iteration_bounds = array<i64: 2>, scalar_prefetch = 0 : i64, scratch_operands = 0 : i64, tpu.core_type = #tpu.core_type<tc>, window_params = [{transform_indices = @transform_0, window_bounds = array<i64: 1, 16, 128>}, {transform_indices = @transform_1, window_bounds = array<i64: 1, 8, 128>}, {pipeline_mode = #tpu.pipeline_mode<synchronous>, transform_indices = @transform_2, window_bounds = array<i64: 1, 128>}, {pipeline_mode = #tpu.pipeline_mode<synchronous>, transform_indices = @transform_3, window_bounds = array<i64: 1, 128>}, {pipeline_mode = #tpu.pipeline_mode<synchronous>, transform_indices = @transform_4, window_bounds = array<i64: 1, 128>}, {pipeline_mode = #tpu.pipeline_mode<synchronous>, transform_indices = @transform_5, window_bounds = array<i64: 1, 128>}, {pipeline_mode = #tpu.pipeline_mode<synchronous>, transform_indices = @transform_6, window_bounds = array<i64: 1, 128>}, {pipeline_mode = #tpu.pipeline_mode<synchronous>, transform_indices = @transform_7, window_bounds = array<i64: 1, 128>}, {transform_indices = @transform_8, window_bounds = array<i64: 1, 8, 128>}]} {
    %c0 = arith.constant 0 : index
    %c0_0 = arith.constant 0 : index
    %c0_1 = arith.constant 0 : index
    %0 = vector.load %arg1[%c0, %c0_0, %c0_1] : memref<1x16x128xf32, #tpu.memory_space<vmem>>, vector<1x16x128xf32>
    %1 = vector.shape_cast %0 : vector<1x16x128xf32> to vector<16x128xf32>
    %c0_2 = arith.constant 0 : index
    %c0_3 = arith.constant 0 : index
    %2 = vector.load %arg5[%c0_2, %c0_3] : memref<1x128xf32, #tpu.memory_space<vmem>>, vector<1x128xf32>
    %c0_4 = arith.constant 0 : index
    %c0_5 = arith.constant 0 : index
    %3 = vector.load %arg6[%c0_4, %c0_5] : memref<1x128xf32, #tpu.memory_space<vmem>>, vector<1x128xf32>
    %cst = arith.constant dense<0.000000e+00> : vector<16xf32>
    %4 = vector.multi_reduction <add>, %1, %cst [1] : vector<16x128xf32> to vector<16xf32>
    %5 = vector.shape_cast %4 : vector<16xf32> to vector<16x1xf32>
    %cst_6 = arith.constant 1.280000e+02 : f32
    %6 = vector.broadcast %cst_6 : f32 to vector<16x1xf32>
    %7 = arith.divf %5, %6 : vector<16x1xf32>
    %8 = vector.broadcast %7 : vector<16x1xf32> to vector<16x128xf32>
    %9 = arith.subf %1, %8 : vector<16x128xf32>
    %10 = arith.mulf %9, %9 : vector<16x128xf32>
    %cst_7 = arith.constant dense<0.000000e+00> : vector<16xf32>
    %11 = vector.multi_reduction <add>, %10, %cst_7 [1] : vector<16x128xf32> to vector<16xf32>
    %12 = vector.shape_cast %11 : vector<16xf32> to vector<16x1xf32>
    %cst_8 = arith.constant 1.280000e+02 : f32
    %13 = vector.broadcast %cst_8 : f32 to vector<16x1xf32>
    %14 = arith.divf %12, %13 : vector<16x1xf32>
    %cst_9 = arith.constant 9.99999974E-6 : f32
    %15 = vector.broadcast %cst_9 : f32 to vector<16x1xf32>
    %16 = arith.addf %14, %15 : vector<16x1xf32>
    %17 = math.rsqrt %16 : vector<16x1xf32>
    %18 = vector.broadcast %17 : vector<16x1xf32> to vector<16x128xf32>
    %19 = arith.mulf %9, %18 : vector<16x128xf32>
    %20 = vector.broadcast %2 : vector<1x128xf32> to vector<16x128xf32>
    %21 = arith.mulf %19, %20 : vector<16x128xf32>
    %22 = vector.broadcast %3 : vector<1x128xf32> to vector<16x128xf32>
    %23 = arith.addf %21, %22 : vector<16x128xf32>
    %c0_10 = arith.constant 0 : index
    %c0_11 = arith.constant 0 : index
    %24 = vector.load %arg3[%c0_10, %c0_11] : memref<1x128xf32, #tpu.memory_space<vmem>>, vector<1x128xf32>
    %c0_12 = arith.constant 0 : index
    %c0_13 = arith.constant 0 : index
    %25 = vector.load %arg4[%c0_12, %c0_13] : memref<1x128xf32, #tpu.memory_space<vmem>>, vector<1x128xf32>
    %26 = math.exp %25 : vector<1x128xf32>
    %c0_14 = arith.constant 0 : index
    %c0_15 = arith.constant 0 : index
    %c0_16 = arith.constant 0 : index
    %27 = vector.load %arg2[%c0_14, %c0_15, %c0_16] : memref<1x8x128xf32, #tpu.memory_space<vmem>>, vector<1x8x128xf32>
    %28 = vector.shape_cast %27 : vector<1x8x128xf32> to vector<8x128xf32>
    %29 = vector.broadcast %26 : vector<1x128xf32> to vector<8x128xf32>
    %30 = arith.mulf %29, %28 : vector<8x128xf32>
    %31 = vector.broadcast %24 : vector<1x128xf32> to vector<8x128xf32>
    %32 = arith.addf %31, %30 : vector<8x128xf32>
    %c0_17 = arith.constant 0 : index
    %c0_18 = arith.constant 0 : index
    %33 = vector.load %arg7[%c0_17, %c0_18] : memref<1x128xf32, #tpu.memory_space<vmem>>, vector<1x128xf32>
    %c0_19 = arith.constant 0 : index
    %c0_20 = arith.constant 0 : index
    %34 = vector.load %arg8[%c0_19, %c0_20] : memref<1x128xf32, #tpu.memory_space<vmem>>, vector<1x128xf32>
    %cst_21 = arith.constant dense<0.000000e+00> : vector<8xf32>
    %35 = vector.multi_reduction <add>, %32, %cst_21 [1] : vector<8x128xf32> to vector<8xf32>
    %36 = vector.shape_cast %35 : vector<8xf32> to vector<8x1xf32>
    %cst_22 = arith.constant 1.280000e+02 : f32
    %37 = vector.broadcast %cst_22 : f32 to vector<8x1xf32>
    %38 = arith.divf %36, %37 : vector<8x1xf32>
    %39 = vector.broadcast %38 : vector<8x1xf32> to vector<8x128xf32>
    %40 = arith.subf %32, %39 : vector<8x128xf32>
    %41 = arith.mulf %40, %40 : vector<8x128xf32>
    %cst_23 = arith.constant dense<0.000000e+00> : vector<8xf32>
    %42 = vector.multi_reduction <add>, %41, %cst_23 [1] : vector<8x128xf32> to vector<8xf32>
    %43 = vector.shape_cast %42 : vector<8xf32> to vector<8x1xf32>
    %cst_24 = arith.constant 1.280000e+02 : f32
    %44 = vector.broadcast %cst_24 : f32 to vector<8x1xf32>
    %45 = arith.divf %43, %44 : vector<8x1xf32>
    %cst_25 = arith.constant 9.99999974E-6 : f32
    %46 = vector.broadcast %cst_25 : f32 to vector<8x1xf32>
    %47 = arith.addf %45, %46 : vector<8x1xf32>
    %48 = math.rsqrt %47 : vector<8x1xf32>
    %49 = vector.broadcast %48 : vector<8x1xf32> to vector<8x128xf32>
    %50 = arith.mulf %40, %49 : vector<8x128xf32>
    %51 = vector.broadcast %33 : vector<1x128xf32> to vector<8x128xf32>
    %52 = arith.mulf %50, %51 : vector<8x128xf32>
    %53 = vector.broadcast %34 : vector<1x128xf32> to vector<8x128xf32>
    %54 = arith.addf %52, %53 : vector<8x128xf32>
    %55 = arith.mulf %54, %54 : vector<8x128xf32>
    %cst_26 = arith.constant dense<0.000000e+00> : vector<8xf32>
    %56 = vector.multi_reduction <add>, %55, %cst_26 [1] : vector<8x128xf32> to vector<8xf32>
    %57 = vector.shape_cast %56 : vector<8xf32> to vector<8x1xf32>
    %cst_27 = arith.constant dense<0.000000e+00> : vector<8x16xf32>
    %58 = tpu.matmul %54, %23, %cst_27 {dimension_numbers = #tpu.dot_dimension_numbers<[1], [1], [0], [0], [0, 0, 1, 0], [], []>} : vector<8x128xf32>, vector<16x128xf32>, vector<8x16xf32> -> vector<8x16xf32>
    %cst_28 = arith.constant 2.000000e+00 : f32
    %59 = vector.broadcast %cst_28 : f32 to vector<8x16xf32>
    %60 = arith.mulf %59, %58 : vector<8x16xf32>
    %61 = vector.broadcast %57 : vector<8x1xf32> to vector<8x16xf32>
    %62 = arith.subf %61, %60 : vector<8x16xf32>
    %cst_29 = arith.constant 0.0883883461 : f32
    %63 = vector.broadcast %cst_29 : f32 to vector<8x16xf32>
    %64 = arith.mulf %62, %63 : vector<8x16xf32>
    %cst_30 = arith.constant dense<0xFF800000> : vector<16xf32>
    %65 = vector.multi_reduction <maximumf>, %64, %cst_30 [0] : vector<8x16xf32> to vector<16xf32>
    %66 = vector.shape_cast %65 : vector<16xf32> to vector<1x16xf32>
    %67 = vector.broadcast %66 : vector<1x16xf32> to vector<8x16xf32>
    %68 = arith.subf %64, %67 : vector<8x16xf32>
    %69 = math.exp %68 : vector<8x16xf32>
    %cst_31 = arith.constant dense<0.000000e+00> : vector<16xf32>
    %70 = vector.multi_reduction <add>, %69, %cst_31 [0] : vector<8x16xf32> to vector<16xf32>
    %71 = vector.shape_cast %70 : vector<16xf32> to vector<1x16xf32>
    %72 = tpu.reciprocal %71 {approx = true} : vector<1x16xf32> -> vector<1x16xf32>
    %73 = vector.broadcast %72 : vector<1x16xf32> to vector<8x16xf32>
    %74 = arith.mulf %69, %73 : vector<8x16xf32>
    %cst_32 = arith.constant 9.99999993E-9 : f32
    %75 = vector.broadcast %cst_32 : f32 to vector<8x16xf32>
    %76 = arith.addf %74, %75 : vector<8x16xf32>
    %cst_33 = arith.constant dense<0.000000e+00> : vector<8xf32>
    %77 = vector.multi_reduction <add>, %76, %cst_33 [1] : vector<8x16xf32> to vector<8xf32>
    %78 = vector.shape_cast %77 : vector<8xf32> to vector<8x1xf32>
    %79 = tpu.reciprocal %78 {approx = true} : vector<8x1xf32> -> vector<8x1xf32>
    %80 = vector.broadcast %79 : vector<8x1xf32> to vector<8x16xf32>
    %81 = arith.mulf %76, %80 : vector<8x16xf32>
    %cst_34 = arith.constant dense<0.000000e+00> : vector<8x128xf32>
    %82 = tpu.matmul %81, %23, %cst_34 {dimension_numbers = #tpu.dot_dimension_numbers<[1], [0], [0], [1], [0, 0, 1, 1], [], []>} : vector<8x16xf32>, vector<16x128xf32>, vector<8x128xf32> -> vector<8x128xf32>
    %c0_35 = arith.constant 0 : index
    %c0_36 = arith.constant 0 : index
    %83 = vector.load %arg7[%c0_35, %c0_36] : memref<1x128xf32, #tpu.memory_space<vmem>>, vector<1x128xf32>
    %c0_37 = arith.constant 0 : index
    %c0_38 = arith.constant 0 : index
    %84 = vector.load %arg8[%c0_37, %c0_38] : memref<1x128xf32, #tpu.memory_space<vmem>>, vector<1x128xf32>
    %cst_39 = arith.constant dense<0.000000e+00> : vector<8xf32>
    %85 = vector.multi_reduction <add>, %82, %cst_39 [1] : vector<8x128xf32> to vector<8xf32>
    %86 = vector.shape_cast %85 : vector<8xf32> to vector<8x1xf32>
    %cst_40 = arith.constant 1.280000e+02 : f32
    %87 = vector.broadcast %cst_40 : f32 to vector<8x1xf32>
    %88 = arith.divf %86, %87 : vector<8x1xf32>
    %89 = vector.broadcast %88 : vector<8x1xf32> to vector<8x128xf32>
    %90 = arith.subf %82, %89 : vector<8x128xf32>
    %91 = arith.mulf %90, %90 : vector<8x128xf32>
    %cst_41 = arith.constant dense<0.000000e+00> : vector<8xf32>
    %92 = vector.multi_reduction <add>, %91, %cst_41 [1] : vector<8x128xf32> to vector<8xf32>
    %93 = vector.shape_cast %92 : vector<8xf32> to vector<8x1xf32>
    %cst_42 = arith.constant 1.280000e+02 : f32
    %94 = vector.broadcast %cst_42 : f32 to vector<8x1xf32>
    %95 = arith.divf %93, %94 : vector<8x1xf32>
    %cst_43 = arith.constant 9.99999974E-6 : f32
    %96 = vector.broadcast %cst_43 : f32 to vector<8x1xf32>
    %97 = arith.addf %95, %96 : vector<8x1xf32>
    %98 = math.rsqrt %97 : vector<8x1xf32>
    %99 = vector.broadcast %98 : vector<8x1xf32> to vector<8x128xf32>
    %100 = arith.mulf %90, %99 : vector<8x128xf32>
    %101 = vector.broadcast %83 : vector<1x128xf32> to vector<8x128xf32>
    %102 = arith.mulf %100, %101 : vector<8x128xf32>
    %103 = vector.broadcast %84 : vector<1x128xf32> to vector<8x128xf32>
    %104 = arith.addf %102, %103 : vector<8x128xf32>
    %105 = arith.mulf %104, %104 : vector<8x128xf32>
    %cst_44 = arith.constant dense<0.000000e+00> : vector<8xf32>
    %106 = vector.multi_reduction <add>, %105, %cst_44 [1] : vector<8x128xf32> to vector<8xf32>
    %107 = vector.shape_cast %106 : vector<8xf32> to vector<8x1xf32>
    %cst_45 = arith.constant dense<0.000000e+00> : vector<8x16xf32>
    %108 = tpu.matmul %104, %23, %cst_45 {dimension_numbers = #tpu.dot_dimension_numbers<[1], [1], [0], [0], [0, 0, 1, 0], [], []>} : vector<8x128xf32>, vector<16x128xf32>, vector<8x16xf32> -> vector<8x16xf32>
    %cst_46 = arith.constant 2.000000e+00 : f32
    %109 = vector.broadcast %cst_46 : f32 to vector<8x16xf32>
    %110 = arith.mulf %109, %108 : vector<8x16xf32>
    %111 = vector.broadcast %107 : vector<8x1xf32> to vector<8x16xf32>
    %112 = arith.subf %111, %110 : vector<8x16xf32>
    %cst_47 = arith.constant 0.0883883461 : f32
    %113 = vector.broadcast %cst_47 : f32 to vector<8x16xf32>
    %114 = arith.mulf %112, %113 : vector<8x16xf32>
    %cst_48 = arith.constant dense<0xFF800000> : vector<16xf32>
    %115 = vector.multi_reduction <maximumf>, %114, %cst_48 [0] : vector<8x16xf32> to vector<16xf32>
    %116 = vector.shape_cast %115 : vector<16xf32> to vector<1x16xf32>
    %117 = vector.broadcast %116 : vector<1x16xf32> to vector<8x16xf32>
    %118 = arith.subf %114, %117 : vector<8x16xf32>
    %119 = math.exp %118 : vector<8x16xf32>
    %cst_49 = arith.constant dense<0.000000e+00> : vector<16xf32>
    %120 = vector.multi_reduction <add>, %119, %cst_49 [0] : vector<8x16xf32> to vector<16xf32>
    %121 = vector.shape_cast %120 : vector<16xf32> to vector<1x16xf32>
    %122 = tpu.reciprocal %121 {approx = true} : vector<1x16xf32> -> vector<1x16xf32>
    %123 = vector.broadcast %122 : vector<1x16xf32> to vector<8x16xf32>
    %124 = arith.mulf %119, %123 : vector<8x16xf32>
    %cst_50 = arith.constant 9.99999993E-9 : f32
    %125 = vector.broadcast %cst_50 : f32 to vector<8x16xf32>
    %126 = arith.addf %124, %125 : vector<8x16xf32>
    %cst_51 = arith.constant dense<0.000000e+00> : vector<8xf32>
    %127 = vector.multi_reduction <add>, %126, %cst_51 [1] : vector<8x16xf32> to vector<8xf32>
    %128 = vector.shape_cast %127 : vector<8xf32> to vector<8x1xf32>
    %129 = tpu.reciprocal %128 {approx = true} : vector<8x1xf32> -> vector<8x1xf32>
    %130 = vector.broadcast %129 : vector<8x1xf32> to vector<8x16xf32>
    %131 = arith.mulf %126, %130 : vector<8x16xf32>
    %cst_52 = arith.constant dense<0.000000e+00> : vector<8x128xf32>
    %132 = tpu.matmul %131, %23, %cst_52 {dimension_numbers = #tpu.dot_dimension_numbers<[1], [0], [0], [1], [0, 0, 1, 1], [], []>} : vector<8x16xf32>, vector<16x128xf32>, vector<8x128xf32> -> vector<8x128xf32>
    %c0_53 = arith.constant 0 : index
    %c0_54 = arith.constant 0 : index
    %133 = vector.load %arg7[%c0_53, %c0_54] : memref<1x128xf32, #tpu.memory_space<vmem>>, vector<1x128xf32>
    %c0_55 = arith.constant 0 : index
    %c0_56 = arith.constant 0 : index
    %134 = vector.load %arg8[%c0_55, %c0_56] : memref<1x128xf32, #tpu.memory_space<vmem>>, vector<1x128xf32>
    %cst_57 = arith.constant dense<0.000000e+00> : vector<8xf32>
    %135 = vector.multi_reduction <add>, %132, %cst_57 [1] : vector<8x128xf32> to vector<8xf32>
    %136 = vector.shape_cast %135 : vector<8xf32> to vector<8x1xf32>
    %cst_58 = arith.constant 1.280000e+02 : f32
    %137 = vector.broadcast %cst_58 : f32 to vector<8x1xf32>
    %138 = arith.divf %136, %137 : vector<8x1xf32>
    %139 = vector.broadcast %138 : vector<8x1xf32> to vector<8x128xf32>
    %140 = arith.subf %132, %139 : vector<8x128xf32>
    %141 = arith.mulf %140, %140 : vector<8x128xf32>
    %cst_59 = arith.constant dense<0.000000e+00> : vector<8xf32>
    %142 = vector.multi_reduction <add>, %141, %cst_59 [1] : vector<8x128xf32> to vector<8xf32>
    %143 = vector.shape_cast %142 : vector<8xf32> to vector<8x1xf32>
    %cst_60 = arith.constant 1.280000e+02 : f32
    %144 = vector.broadcast %cst_60 : f32 to vector<8x1xf32>
    %145 = arith.divf %143, %144 : vector<8x1xf32>
    %cst_61 = arith.constant 9.99999974E-6 : f32
    %146 = vector.broadcast %cst_61 : f32 to vector<8x1xf32>
    %147 = arith.addf %145, %146 : vector<8x1xf32>
    %148 = math.rsqrt %147 : vector<8x1xf32>
    %149 = vector.broadcast %148 : vector<8x1xf32> to vector<8x128xf32>
    %150 = arith.mulf %140, %149 : vector<8x128xf32>
    %151 = vector.broadcast %133 : vector<1x128xf32> to vector<8x128xf32>
    %152 = arith.mulf %150, %151 : vector<8x128xf32>
    %153 = vector.broadcast %134 : vector<1x128xf32> to vector<8x128xf32>
    %154 = arith.addf %152, %153 : vector<8x128xf32>
    %155 = arith.mulf %154, %154 : vector<8x128xf32>
    %cst_62 = arith.constant dense<0.000000e+00> : vector<8xf32>
    %156 = vector.multi_reduction <add>, %155, %cst_62 [1] : vector<8x128xf32> to vector<8xf32>
    %157 = vector.shape_cast %156 : vector<8xf32> to vector<8x1xf32>
    %cst_63 = arith.constant dense<0.000000e+00> : vector<8x16xf32>
    %158 = tpu.matmul %154, %23, %cst_63 {dimension_numbers = #tpu.dot_dimension_numbers<[1], [1], [0], [0], [0, 0, 1, 0], [], []>} : vector<8x128xf32>, vector<16x128xf32>, vector<8x16xf32> -> vector<8x16xf32>
    %cst_64 = arith.constant 2.000000e+00 : f32
    %159 = vector.broadcast %cst_64 : f32 to vector<8x16xf32>
    %160 = arith.mulf %159, %158 : vector<8x16xf32>
    %161 = vector.broadcast %157 : vector<8x1xf32> to vector<8x16xf32>
    %162 = arith.subf %161, %160 : vector<8x16xf32>
    %cst_65 = arith.constant 0.0883883461 : f32
    %163 = vector.broadcast %cst_65 : f32 to vector<8x16xf32>
    %164 = arith.mulf %162, %163 : vector<8x16xf32>
    %cst_66 = arith.constant dense<0xFF800000> : vector<16xf32>
    %165 = vector.multi_reduction <maximumf>, %164, %cst_66 [0] : vector<8x16xf32> to vector<16xf32>
    %166 = vector.shape_cast %165 : vector<16xf32> to vector<1x16xf32>
    %167 = vector.broadcast %166 : vector<1x16xf32> to vector<8x16xf32>
    %168 = arith.subf %164, %167 : vector<8x16xf32>
    %169 = math.exp %168 : vector<8x16xf32>
    %cst_67 = arith.constant dense<0.000000e+00> : vector<16xf32>
    %170 = vector.multi_reduction <add>, %169, %cst_67 [0] : vector<8x16xf32> to vector<16xf32>
    %171 = vector.shape_cast %170 : vector<16xf32> to vector<1x16xf32>
    %172 = tpu.reciprocal %171 {approx = true} : vector<1x16xf32> -> vector<1x16xf32>
    %173 = vector.broadcast %172 : vector<1x16xf32> to vector<8x16xf32>
    %174 = arith.mulf %169, %173 : vector<8x16xf32>
    %cst_68 = arith.constant 9.99999993E-9 : f32
    %175 = vector.broadcast %cst_68 : f32 to vector<8x16xf32>
    %176 = arith.addf %174, %175 : vector<8x16xf32>
    %cst_69 = arith.constant dense<0.000000e+00> : vector<8xf32>
    %177 = vector.multi_reduction <add>, %176, %cst_69 [1] : vector<8x16xf32> to vector<8xf32>
    %178 = vector.shape_cast %177 : vector<8xf32> to vector<8x1xf32>
    %179 = tpu.reciprocal %178 {approx = true} : vector<8x1xf32> -> vector<8x1xf32>
    %180 = vector.broadcast %179 : vector<8x1xf32> to vector<8x16xf32>
    %181 = arith.mulf %176, %180 : vector<8x16xf32>
    %cst_70 = arith.constant dense<0.000000e+00> : vector<8x128xf32>
    %182 = tpu.matmul %181, %23, %cst_70 {dimension_numbers = #tpu.dot_dimension_numbers<[1], [0], [0], [1], [0, 0, 1, 1], [], []>} : vector<8x16xf32>, vector<16x128xf32>, vector<8x128xf32> -> vector<8x128xf32>
    %c0_71 = arith.constant 0 : index
    %c0_72 = arith.constant 0 : index
    %c0_73 = arith.constant 0 : index
    %183 = vector.load %arg9[%c0_71, %c0_72, %c0_73] : memref<1x8x128xf32, #tpu.memory_space<vmem>>, vector<1x8x128xf32>
    %184 = vector.shape_cast %183 : vector<1x8x128xf32> to vector<8x128xf32>
    %185 = vector.shape_cast %182 : vector<8x128xf32> to vector<1x8x128xf32>
    tpu.vector_store %arg9[%c0_71, %c0_72, %c0_73], %185 {strides = array<i32>} : memref<1x8x128xf32, #tpu.memory_space<vmem>>, vector<1x8x128xf32>,
    return
  }
  func.func @transform_0(%arg0: i32) -> (i32, i32, i32) {
    %c0_i32 = arith.constant 0 : i32
    %c0_i32_0 = arith.constant 0 : i32
    %c0_i32_1 = arith.constant 0 : i32
    return %arg0, %c0_i32, %c0_i32_0 : i32, i32, i32
  }
  func.func @transform_1(%arg0: i32) -> (i32, i32, i32) {
    %c0_i32 = arith.constant 0 : i32
    %c0_i32_0 = arith.constant 0 : i32
    %c0_i32_1 = arith.constant 0 : i32
    return %arg0, %c0_i32, %c0_i32_0 : i32, i32, i32
  }
  func.func @transform_2(%arg0: i32) -> (i32, i32) {
    %c0_i32 = arith.constant 0 : i32
    %c0_i32_0 = arith.constant 0 : i32
    %c0_i32_1 = arith.constant 0 : i32
    return %c0_i32, %c0_i32_0 : i32, i32
  }
  func.func @transform_3(%arg0: i32) -> (i32, i32) {
    %c0_i32 = arith.constant 0 : i32
    %c0_i32_0 = arith.constant 0 : i32
    %c0_i32_1 = arith.constant 0 : i32
    return %c0_i32, %c0_i32_0 : i32, i32
  }
  func.func @transform_4(%arg0: i32) -> (i32, i32) {
    %c0_i32 = arith.constant 0 : i32
    %c0_i32_0 = arith.constant 0 : i32
    %c0_i32_1 = arith.constant 0 : i32
    return %c0_i32, %c0_i32_0 : i32, i32
  }
  func.func @transform_5(%arg0: i32) -> (i32, i32) {
    %c0_i32 = arith.constant 0 : i32
    %c0_i32_0 = arith.constant 0 : i32
    %c0_i32_1 = arith.constant 0 : i32
    return %c0_i32, %c0_i32_0 : i32, i32
  }
  func.func @transform_6(%arg0: i32) -> (i32, i32) {
    %c0_i32 = arith.constant 0 : i32
    %c0_i32_0 = arith.constant 0 : i32
    %c0_i32_1 = arith.constant 0 : i32
    return %c0_i32, %c0_i32_0 : i32, i32
  }
  func.func @transform_7(%arg0: i32) -> (i32, i32) {
    %c0_i32 = arith.constant 0 : i32
    %c0_i32_0 = arith.constant 0 : i32
    %c0_i32_1 = arith.constant 0 : i32
    return %c0_i32, %c0_i32_0 : i32, i32
  }
  func.func @transform_8(%arg0: i32) -> (i32, i32, i32) {
    %c0_i32 = arith.constant 0 : i32
    %c0_i32_0 = arith.constant 0 : i32
    %c0_i32_1 = arith.constant 0 : i32
    return %arg0, %c0_i32, %c0_i32_0 : i32, i32, i32
  }
}

</mosaic_0001>

<llo_original>
// kernel: tpu_custom_call.1
$region0: #{tpu_custom_call.1}
  #allocation0 [shape = 'u32[]', space=smem, size = 0x4, offset = 0x4, fixed_abs, tag = 'smem constant byte address 0x4 - core index']
  #allocation1 [shape = 'u32[144,128]{1,0:T(1,128)}', space=vmem, size = 0x12000, scoped, tag = 'internal scratch']
  %s0 = inlined_call_operand.hbm [shape: f32[2,16,128], index: 0, kind: input, shape index: {}]
  %s1 = inlined_call_operand.hbm [shape: f32[2,8,128], index: 1, kind: input, shape index: {}]
  %s2 = inlined_call_operand.vmem [shape: f32[1,128], index: 2, kind: input, shape index: {}]
  %s3 = inlined_call_operand.vmem [shape: f32[1,128], index: 3, kind: input, shape index: {}]
  %s4 = inlined_call_operand.vmem [shape: f32[1,128], index: 4, kind: input, shape index: {}]
  %s5 = inlined_call_operand.vmem [shape: f32[1,128], index: 5, kind: input, shape index: {}]
  %s6 = inlined_call_operand.vmem [shape: f32[1,128], index: 6, kind: input, shape index: {}]
  %s7 = inlined_call_operand.vmem [shape: f32[1,128], index: 7, kind: input, shape index: {}]
  %s8 = inlined_call_operand.hbm [shape: f32[2,8,128], index: 8, kind: output, shape index: {}]
  %s9 = sld [smem:[#allocation0]]
  $region73: #{tpu_custom_call.1} parent=0
    _
  %s11 = ssub.s32 1, %s9
  %s12 = scalar_select 0, %s11, %s9
  $region1: #{tpu_custom_call.1} parent=0
    #allocation2 [shape = 'u8[16384]{0}', space=vmem, size = 0x4000, scoped, tag = 'input window, operand 0']
    #allocation3 [shape = 's32[2]{0}', space=sflag, size = 0x8, scoped, tag = 'scoped memory for tpu_custom_call.1']
    #allocation4 [shape = 's32[2]{0}', space=sflag, size = 0x8, scoped, tag = 'scoped memory for tpu_custom_call.1']
    #allocation5 [shape = 'u8[8192]{0}', space=vmem, size = 0x2000, scoped, tag = 'input window, operand 1']
    #allocation6 [shape = 's32[2]{0}', space=sflag, size = 0x8, scoped, tag = 'scoped memory for tpu_custom_call.1']
    #allocation7 [shape = 'u8[8192]{0}', space=vmem, size = 0x2000, scoped, tag = 'output window, operand 0']
    %13 = vsyncpa [#allocation3], 0
    %s14 = scalar_lea.sflag [#allocation3], 1
    %15 = vsyncpa %s14, 0
    %16 = vsyncpa [#allocation6], 0
    %s17 = scalar_lea.sflag [#allocation6], 1
    %18 = vsyncpa %s17, 0
    %19 = vsyncpa [#allocation4], 0
    %s20 = scalar_lea.sflag [#allocation4], 1
    %21 = vsyncpa %s20, 0
    loop: start=0, step=1, limit=4
    $region2: #{tpu_custom_call.1} parent=1 // loop_pre_header
      _
    $region3: #{tpu_custom_call.1} parent=1 // loop_header
      %s23 = sphi 0, %s27
      %p24 = scmp.ge.s32.totalorder %s23, 4
      %s33 = sphi 0, %s35
      %s36 = sphi 0, %s33
      %s37 = sphi 0, %s36
      %s53 = sphi 0, %s37
      %s59 = sphi 0, %s61
      %s62 = sphi 0, %s59
      %s63 = sphi 0, %s62
      %s79 = sphi 0, %s63
      %s83 = sphi 0, %s83
      %s85 = sphi 0, %s83
      %s86 = sphi 0, %s85
      %s100 = sphi 0, %s86
      %s104 = sphi 0, %s104
      %s106 = sphi 0, %s104
      %s107 = sphi 0, %s106
      %s121 = sphi 0, %s107
      %s125 = sphi 0, %s125
      %s127 = sphi 0, %s125
      %s128 = sphi 0, %s127
      %s142 = sphi 0, %s128
      %s146 = sphi 0, %s146
      %s148 = sphi 0, %s146
      %s149 = sphi 0, %s148
      %s163 = sphi 0, %s149
      %s167 = sphi 0, %s167
      %s169 = sphi 0, %s167
      %s170 = sphi 0, %s169
      %s184 = sphi 0, %s170
      %s188 = sphi 0, %s188
      %s190 = sphi 0, %s188
      %s191 = sphi 0, %s190
      %s205 = sphi 0, %s191
      %s211 = sphi 0, %s213
      %s214 = sphi 0, %s211
      %s215 = sphi 0, %s214
      %s231 = sphi 0, %s215
    $region4: #{tpu_custom_call.1} parent=1 // loop_header_branch
      %26 = sbr.rel (%p24) target = $region8
    $region5: #{tpu_custom_call.1} parent=1 // loop_body
      %s28 = ssub.s32 %s23, 1
      %s29 = ssub.s32 %s23, 2
      %s30 = sadd.s32 %s23, 1
      %s31 = ssub.s32 %s23, %s30
      %p32 = scmp.eq.s32.totalorder %s31, 0
      %s34 = sadd.s32 %s33, 1
      %s35 = scalar_select %p32, %s33, %s34
      %p38 = pneg %p32
      %p39 = scmp.eq.s32.totalorder %s23, 1
      %p40 = por %p38, %p39
      %p41 = scmp.ne.s32.totalorder %s33, %s36
      %p42 = scmp.eq.s32.totalorder %s23, 0
      %p43 = por %p41, %p42
      %p44 = scmp.ne.s32.totalorder %s33, %s36
      %p45 = scmp.eq.s32.totalorder %s28, 1
      %p46 = por %p44, %p45
      %p47 = scmp.ne.s32.totalorder %s36, %s37
      %p48 = scmp.eq.s32.totalorder %s28, 0
      %p49 = por %p47, %p48
      %p50 = scmp.ne.s32.totalorder %s36, %s37
      %p51 = scmp.eq.s32.totalorder %s29, 1
      %p52 = por %p50, %p51
      %p54 = scmp.ne.s32.totalorder %s37, %s53
      %p55 = scmp.eq.s32.totalorder %s29, 0
      %p56 = por %p54, %p55
      %s57 = ssub.s32 %s23, %s30
      %p58 = scmp.eq.s32.totalorder %s57, 0
      %s60 = sadd.s32 %s59, 1
      %s61 = scalar_select %p58, %s59, %s60
      %p64 = pneg %p58
      %p65 = scmp.eq.s32.totalorder %s23, 1
      %p66 = por %p64, %p65
      %p67 = scmp.ne.s32.totalorder %s59, %s62
      %p68 = scmp.eq.s32.totalorder %s23, 0
      %p69 = por %p67, %p68
      %p70 = scmp.ne.s32.totalorder %s59, %s62
      %p71 = scmp.eq.s32.totalorder %s28, 1
      %p72 = por %p70, %p71
      %p73 = scmp.ne.s32.totalorder %s62, %s63
      %p74 = scmp.eq.s32.totalorder %s28, 0
      %p75 = por %p73, %p74
      %p76 = scmp.ne.s32.totalorder %s62, %s63
      %p77 = scmp.eq.s32.totalorder %s29, 1
      %p78 = por %p76, %p77
      %p80 = scmp.ne.s32.totalorder %s63, %s79
      %p81 = scmp.eq.s32.totalorder %s29, 0
      %p82 = por %p80, %p81
      %s84 = sadd.s32 %s83, 1
      %p87 = scmp.eq.s32.totalorder %s23, 1
      %p88 = scmp.ne.s32.totalorder %s83, %s85
      %p89 = scmp.eq.s32.totalorder %s23, 0
      %p90 = por %p88, %p89
      %p91 = scmp.ne.s32.totalorder %s83, %s85
      %p92 = scmp.eq.s32.totalorder %s28, 1
      %p93 = por %p91, %p92
      %p94 = scmp.ne.s32.totalorder %s85, %s86
      %p95 = scmp.eq.s32.totalorder %s28, 0
      %p96 = por %p94, %p95
      %p97 = scmp.ne.s32.totalorder %s85, %s86
      %p98 = scmp.eq.s32.totalorder %s29, 1
      %p99 = por %p97, %p98
      %p101 = scmp.ne.s32.totalorder %s86, %s100
      %p102 = scmp.eq.s32.totalorder %s29, 0
      %p103 = por %p101, %p102
      %s105 = sadd.s32 %s104, 1
      %p108 = scmp.eq.s32.totalorder %s23, 1
      %p109 = scmp.ne.s32.totalorder %s104, %s106
      %p110 = scmp.eq.s32.totalorder %s23, 0
      %p111 = por %p109, %p110
      %p112 = scmp.ne.s32.totalorder %s104, %s106
      %p113 = scmp.eq.s32.totalorder %s28, 1
      %p114 = por %p112, %p113
      %p115 = scmp.ne.s32.totalorder %s106, %s107
      %p116 = scmp.eq.s32.totalorder %s28, 0
      %p117 = por %p115, %p116
      %p118 = scmp.ne.s32.totalorder %s106, %s107
      %p119 = scmp.eq.s32.totalorder %s29, 1
      %p120 = por %p118, %p119
      %p122 = scmp.ne.s32.totalorder %s107, %s121
      %p123 = scmp.eq.s32.totalorder %s29, 0
      %p124 = por %p122, %p123
      %s126 = sadd.s32 %s125, 1
      %p129 = scmp.eq.s32.totalorder %s23, 1
      %p130 = scmp.ne.s32.totalorder %s125, %s127
      %p131 = scmp.eq.s32.totalorder %s23, 0
      %p132 = por %p130, %p131
      %p133 = scmp.ne.s32.totalorder %s125, %s127
      %p134 = scmp.eq.s32.totalorder %s28, 1
      %p135 = por %p133, %p134
      %p136 = scmp.ne.s32.totalorder %s127, %s128
      %p137 = scmp.eq.s32.totalorder %s28, 0
      %p138 = por %p136, %p137
      %p139 = scmp.ne.s32.totalorder %s127, %s128
      %p140 = scmp.eq.s32.totalorder %s29, 1
      %p141 = por %p139, %p140
      %p143 = scmp.ne.s32.totalorder %s128, %s142
      %p144 = scmp.eq.s32.totalorder %s29, 0
      %p145 = por %p143, %p144
      %s147 = sadd.s32 %s146, 1
      %p150 = scmp.eq.s32.totalorder %s23, 1
      %p151 = scmp.ne.s32.totalorder %s146, %s148
      %p152 = scmp.eq.s32.totalorder %s23, 0
      %p153 = por %p151, %p152
      %p154 = scmp.ne.s32.totalorder %s146, %s148
      %p155 = scmp.eq.s32.totalorder %s28, 1
      %p156 = por %p154, %p155
      %p157 = scmp.ne.s32.totalorder %s148, %s149
      %p158 = scmp.eq.s32.totalorder %s28, 0
      %p159 = por %p157, %p158
      %p160 = scmp.ne.s32.totalorder %s148, %s149
      %p161 = scmp.eq.s32.totalorder %s29, 1
      %p162 = por %p160, %p161
      %p164 = scmp.ne.s32.totalorder %s149, %s163
      %p165 = scmp.eq.s32.totalorder %s29, 0
      %p166 = por %p164, %p165
      %s168 = sadd.s32 %s167, 1
      %p171 = scmp.eq.s32.totalorder %s23, 1
      %p172 = scmp.ne.s32.totalorder %s167, %s169
      %p173 = scmp.eq.s32.totalorder %s23, 0
      %p174 = por %p172, %p173
      %p175 = scmp.ne.s32.totalorder %s167, %s169
      %p176 = scmp.eq.s32.totalorder %s28, 1
      %p177 = por %p175, %p176
      %p178 = scmp.ne.s32.totalorder %s169, %s170
      %p179 = scmp.eq.s32.totalorder %s28, 0
      %p180 = por %p178, %p179
      %p181 = scmp.ne.s32.totalorder %s169, %s170
      %p182 = scmp.eq.s32.totalorder %s29, 1
      %p183 = por %p181, %p182
      %p185 = scmp.ne.s32.totalorder %s170, %s184
      %p186 = scmp.eq.s32.totalorder %s29, 0
      %p187 = por %p185, %p186
      %s189 = sadd.s32 %s188, 1
      %p192 = scmp.eq.s32.totalorder %s23, 1
      %p193 = scmp.ne.s32.totalorder %s188, %s190
      %p194 = scmp.eq.s32.totalorder %s23, 0
      %p195 = por %p193, %p194
      %p196 = scmp.ne.s32.totalorder %s188, %s190
      %p197 = scmp.eq.s32.totalorder %s28, 1
      %p198 = por %p196, %p197
      %p199 = scmp.ne.s32.totalorder %s190, %s191
      %p200 = scmp.eq.s32.totalorder %s28, 0
      %p201 = por %p199, %p200
      %p202 = scmp.ne.s32.totalorder %s190, %s191
      %p203 = scmp.eq.s32.totalorder %s29, 1
      %p204 = por %p202, %p203
      %p206 = scmp.ne.s32.totalorder %s191, %s205
      %p207 = scmp.eq.s32.totalorder %s29, 0
      %p208 = por %p206, %p207
      %s209 = ssub.s32 %s23, %s30
      %p210 = scmp.eq.s32.totalorder %s209, 0
      %s212 = sadd.s32 %s211, 1
      %s213 = scalar_select %p210, %s211, %s212
      %p216 = pneg %p210
      %p217 = scmp.eq.s32.totalorder %s23, 1
      %p218 = por %p216, %p217
      %p219 = scmp.ne.s32.totalorder %s211, %s214
      %p220 = scmp.eq.s32.totalorder %s23, 0
      %p221 = por %p219, %p220
      %p222 = scmp.ne.s32.totalorder %s211, %s214
      %p223 = scmp.eq.s32.totalorder %s28, 1
      %p224 = por %p222, %p223
      %p225 = scmp.ne.s32.totalorder %s214, %s215
      %p226 = scmp.eq.s32.totalorder %s28, 0
      %p227 = por %p225, %p226
      %p228 = scmp.ne.s32.totalorder %s214, %s215
      %p229 = scmp.eq.s32.totalorder %s29, 1
      %p230 = por %p228, %p229
      %p232 = scmp.ne.s32.totalorder %s215, %s231
      %p233 = scmp.eq.s32.totalorder %s29, 0
      %p234 = por %p232, %p233
      %p235 = scmp.le.s32.totalorder 1, %s23
      %p236 = scmp.lt.s32.totalorder %s23, 3
      %p237 = pnand %p235, %p236
      %p238 = pneg %p237
      // Predicated region
      $region9: #{tpu_custom_call.1} parent=5 // pred_check
        _
      $region10: #{tpu_custom_call.1} parent=5 // pred_check_branch
        %240 = sbr.rel (%p237) target = $region12
      $region11: #{tpu_custom_call.1} parent=5 // pred_region
        %s241 = ssub.s32 %s23, 1
        // Predicated region
        $region13: #{tpu_custom_call.1} parent=11 // pred_check
          %p242 = pneg %p96
        $region14: #{tpu_custom_call.1} parent=11 // pred_check_branch
          %244 = sbr.rel (%p242) target = $region16
        $region15: #{tpu_custom_call.1} parent=11 // pred_region
          _
        $region16: #{tpu_custom_call.1} parent=11 // pred_fallthru
          _
        // Predicated region
        $region17: #{tpu_custom_call.1} parent=11 // pred_check
          %p245 = pneg %p117
        $region18: #{tpu_custom_call.1} parent=11 // pred_check_branch
          %247 = sbr.rel (%p245) target = $region20
        $region19: #{tpu_custom_call.1} parent=11 // pred_region
          _
        $region20: #{tpu_custom_call.1} parent=11 // pred_fallthru
          _
        // Predicated region
        $region21: #{tpu_custom_call.1} parent=11 // pred_check
          %p248 = pneg %p138
        $region22: #{tpu_custom_call.1} parent=11 // pred_check_branch
          %250 = sbr.rel (%p248) target = $region24
        $region23: #{tpu_custom_call.1} parent=11 // pred_region
          _
        $region24: #{tpu_custom_call.1} parent=11 // pred_fallthru
          _
        // Predicated region
        $region25: #{tpu_custom_call.1} parent=11 // pred_check
          %p251 = pneg %p159
        $region26: #{tpu_custom_call.1} parent=11 // pred_check_branch
          %253 = sbr.rel (%p251) target = $region28
        $region27: #{tpu_custom_call.1} parent=11 // pred_region
          _
        $region28: #{tpu_custom_call.1} parent=11 // pred_fallthru
          _
        // Predicated region
        $region29: #{tpu_custom_call.1} parent=11 // pred_check
          %p254 = pneg %p180
        $region30: #{tpu_custom_call.1} parent=11 // pred_check_branch
          %256 = sbr.rel (%p254) target = $region32
        $region31: #{tpu_custom_call.1} parent=11 // pred_region
          _
        $region32: #{tpu_custom_call.1} parent=11 // pred_fallthru
          _
        // Predicated region
        $region33: #{tpu_custom_call.1} parent=11 // pred_check
          %p257 = pneg %p201
        $region34: #{tpu_custom_call.1} parent=11 // pred_check_branch
          %259 = sbr.rel (%p257) target = $region36
        $region35: #{tpu_custom_call.1} parent=11 // pred_region
          _
        $region36: #{tpu_custom_call.1} parent=11 // pred_fallthru
          _
      $region12: #{tpu_custom_call.1} parent=5 // pred_fallthru
        _
      %p260 = scmp.lt.s32.totalorder %s23, 2
      // Predicated region
      $region37: #{tpu_custom_call.1} parent=5 // pred_check
        %p261 = pneg %p260
      $region38: #{tpu_custom_call.1} parent=5 // pred_check_branch
        %263 = sbr.rel (%p261) target = $region40
      $region39: #{tpu_custom_call.1} parent=5 // pred_region
        // Predicated region
        $region41: #{tpu_custom_call.1} parent=39 // pred_check
          %p264 = pneg %p43
        $region42: #{tpu_custom_call.1} parent=39 // pred_check_branch
          %266 = sbr.rel (%p264) target = $region44
        $region43: #{tpu_custom_call.1} parent=39 // pred_region
          %s267 = sand.u32 %s33, 1
          %s268 = scalar_lea.sflag [#allocation3], %s267
          %s269 = sand.u32 %s33, 1
          %s270 = smul.addr %s269, 16
          %s271 = scalar_lea.vmem [#allocation2], %s270
          %s273 = ssub.s32 256, 256
          %274 = vsyncadd %s268, %s273
          %s275 = smul.addr %s23, 2
          %s276 = smul.addr %s275, 128
          %s277 = scalar_lea.hbm %s0, %s276
          %s278 = sshll.u32 %s271, 4
          %s279 = int_to_ptr.vmem [resolvable:$true] %s278
          %284 = dma.hbm_to_vmem [thread:$0]  %s277, 256, %s279, %s268, 128, 128, 8
        $region44: #{tpu_custom_call.1} parent=39 // pred_fallthru
          _
        // Predicated region
        $region45: #{tpu_custom_call.1} parent=39 // pred_check
          %p285 = pneg %p69
        $region46: #{tpu_custom_call.1} parent=39 // pred_check_branch
          %287 = sbr.rel (%p285) target = $region48
        $region47: #{tpu_custom_call.1} parent=39 // pred_region
          %s288 = sand.u32 %s59, 1
          %s289 = scalar_lea.sflag [#allocation6], %s288
          %s290 = sand.u32 %s59, 1
          %s291 = smul.addr %s290, 8
          %s292 = scalar_lea.vmem [#allocation5], %s291
          %s294 = ssub.s32 128, 128
          %295 = vsyncadd %s289, %s294
          %s296 = smul.addr %s23, 128
          %s297 = scalar_lea.hbm %s1, %s296
          %s299 = sshll.u32 %s292, 4
          %s300 = int_to_ptr.vmem [resolvable:$true] %s299
          %302 = dma.hbm_to_vmem [thread:$0]  %s297, 128, %s300, %s289
        $region48: #{tpu_custom_call.1} parent=39 // pred_fallthru
          _
      $region40: #{tpu_custom_call.1} parent=5 // pred_fallthru
        _
      %p303 = scmp.le.s32.totalorder 1, %s23
      %p304 = scmp.lt.s32.totalorder %s23, 3
      %p305 = pnand %p303, %p304
      %p306 = pneg %p305
      // Predicated region
      $region49: #{tpu_custom_call.1} parent=5 // pred_check
        _
      $region50: #{tpu_custom_call.1} parent=5 // pred_check_branch
        %308 = sbr.rel (%p305) target = $region52
      $region51: #{tpu_custom_call.1} parent=5 // pred_region
        %s309 = ssub.s32 %s23, 1
        %s310 = sand.u32 %s36, 1
        %s311 = scalar_lea.sflag [#allocation3], %s310
        %s312 = sand.u32 %s36, 1
        %s313 = smul.addr %s312, 16
        %s314 = scalar_lea.vmem [#allocation2], %s313
        // Predicated region
        $region53: #{tpu_custom_call.1} parent=51 // pred_check
          %p315 = pneg %p49
        $region54: #{tpu_custom_call.1} parent=51 // pred_check_branch
          %317 = sbr.rel (%p315) target = $region56
        $region55: #{tpu_custom_call.1} parent=51 // pred_region
          %318 = dma.done %s311, 256
        $region56: #{tpu_custom_call.1} parent=51 // pred_fallthru
          _
        %s319 = sand.u32 %s62, 1
        %s320 = scalar_lea.sflag [#allocation6], %s319
        %s321 = sand.u32 %s62, 1
        %s322 = smul.addr %s321, 8
        %s323 = scalar_lea.vmem [#allocation5], %s322
        // Predicated region
        $region57: #{tpu_custom_call.1} parent=51 // pred_check
          %p324 = pneg %p75
        $region58: #{tpu_custom_call.1} parent=51 // pred_check_branch
          %326 = sbr.rel (%p324) target = $region60
        $region59: #{tpu_custom_call.1} parent=51 // pred_region
          %327 = dma.done %s320, 128
        $region60: #{tpu_custom_call.1} parent=51 // pred_fallthru
          _
        %s328 = sand.u32 %s36, 1
        %s329 = scalar_lea.sflag [#allocation3], %s328
        %s330 = sand.u32 %s36, 1
        %s331 = smul.addr %s330, 16
        %s332 = scalar_lea.vmem [#allocation2], %s331
        %p333 = pneg %p49
        %p334 = pneg %p46
        %s335 = sand.u32 %s62, 1
        %s336 = scalar_lea.sflag [#allocation6], %s335
        %s337 = sand.u32 %s62, 1
        %s338 = smul.addr %s337, 8
        %s339 = scalar_lea.vmem [#allocation5], %s338
        %p340 = pneg %p75
        %p341 = pneg %p72
        %p342 = pneg %p96
        %p343 = pneg %p93
        %p344 = pneg %p117
        %p345 = pneg %p114
        %p346 = pneg %p138
        %p347 = pneg %p135
        %p348 = pneg %p159
        %p349 = pneg %p156
        %p350 = pneg %p180
        %p351 = pneg %p177
        %p352 = pneg %p201
        %p353 = pneg %p198
        %p354 = pneg %p227
        %p355 = pneg %p224
        %s356 = sand.u32 %s214, 1
        %s357 = scalar_lea.sflag [#allocation4], %s356
        %s358 = sand.u32 %s214, 1
        %s359 = smul.addr %s358, 8
        %s360 = scalar_lea.vmem [#allocation7], %s359
        %v361 = vld [vmem:[%s314] sm:$0xff]
        %v362 = vld [vmem:[%s314 + $0x8] sm:$0xff]
        %v363 = vld [vmem:[%s4] sm:$0x1]
        %v364 = vld [vmem:[%s5] sm:$0x1]
        %365 = vadd.xlane.f32.xlu0 %v361
        %v366 = vpop.xlane.xlu0 %365
        %367 = vadd.xlane.f32.xlu0 %v362
        %v368 = vpop.xlane.xlu0 %367
        %v369 = vrcp.pop 128.0
        %v370 = vmul.f32 %v366, %v369
        %v371 = vmul.f32 %v368, %v369
        %v372 = vsub.f32 %v361, %v370
        %v373 = vsub.f32 %v362, %v371
        %v374 = vmul.f32 %v372, %v372
        %v375 = vmul.f32 %v373, %v373
        %376 = vadd.xlane.f32.xlu0 %v374
        %v377 = vpop.xlane.xlu0 %376
        %378 = vadd.xlane.f32.xlu0 %v375
        %v379 = vpop.xlane.xlu0 %378
        %v380 = vmul.f32 %v377, %v369
        %v381 = vmul.f32 %v379, %v369
        %v382 = vadd.f32 %v380, 1e-05
        %v383 = vadd.f32 %v381, 1e-05
        %v384 = vrsqrt.pop %v382
        %v385 = vrsqrt.pop %v383
        %v386 = vmul.f32 %v372, %v384
        %v387 = vmul.f32 %v373, %v385
        %v389 = vlaneseq
        %v390 = vshrl.u32 %v389, 7
        %v391 = vsub.s32 0, %v390
        %v392 = vrot.slane %v363, %v391
        %v394 = vmul.f32 %v386, %v392
        %v395 = vmul.f32 %v387, %v392
        %v397 = vlaneseq
        %v398 = vshrl.u32 %v397, 7
        %v399 = vsub.s32 0, %v398
        %v400 = vrot.slane %v364, %v399
        %v402 = vadd.f32 %v394, %v400
        %v403 = vadd.f32 %v395, %v400
        %v404 = vld [vmem:[%s2] sm:$0x1]
        %v405 = vld [vmem:[%s3] sm:$0x1]
        %v406 = vmul.f32 %v405, 1.442695
        %v407 = vpow.pop %v406
        %v408 = vld [vmem:[%s323] sm:$0xff]
        %v410 = vlaneseq
        %v411 = vshrl.u32 %v410, 7
        %v412 = vsub.s32 0, %v411
        %v413 = vrot.slane %v407, %v412
        %v415 = vmul.f32 %v413, %v408
        %v417 = vlaneseq
        %v418 = vshrl.u32 %v417, 7
        %v419 = vsub.s32 0, %v418
        %v420 = vrot.slane %v404, %v419
        %v422 = vadd.f32 %v420, %v415
        %v423 = vld [vmem:[%s6] sm:$0x1]
        %v424 = vld [vmem:[%s7] sm:$0x1]
        %425 = vadd.xlane.f32.xlu0 %v422
        %v426 = vpop.xlane.xlu0 %425
        %v427 = vmul.f32 %v426, %v369
        %v428 = vsub.f32 %v422, %v427
        %v429 = vmul.f32 %v428, %v428
        %430 = vadd.xlane.f32.xlu0 %v429
        %v431 = vpop.xlane.xlu0 %430
        %v432 = vmul.f32 %v431, %v369
        %v433 = vadd.f32 %v432, 1e-05
        %v434 = vrsqrt.pop %v433
        %v435 = vmul.f32 %v428, %v434
        %v437 = vlaneseq
        %v438 = vshrl.u32 %v437, 7
        %v439 = vsub.s32 0, %v438
        %v440 = vrot.slane %v423, %v439
        %v442 = vmul.f32 %v435, %v440
        %v444 = vlaneseq
        %v445 = vshrl.u32 %v444, 7
        %v446 = vsub.s32 0, %v445
        %v447 = vrot.slane %v424, %v446
        %v449 = vadd.f32 %v442, %v447
        %v450 = vmul.f32 %v449, %v449
        %451 = vadd.xlane.f32.xlu0 %v450
        %v452 = vpop.xlane.xlu0 %451
        %453 = vmatprep.subr.mxu0 0.0
        %454 = vmatpush1.xpose.msra.mxu0 0.0
        %455 = vmatprep.subr.mxu0 0.0
        %456 = vmatpush1.xpose.msra.mxu0 0.0
        %457 = vmatprep.subr.mxu0 0.0
        %458 = vmatpush1.xpose.msra.mxu0 0.0
        %459 = vmatprep.subr.mxu0 0.0
        %460 = vmatpush1.xpose.msra.mxu0 0.0
        %461 = vmatprep.subr.mxu0 0.0
        %462 = vmatpush1.xpose.msra.mxu0 0.0
        %463 = vmatprep.subr.mxu0 0.0
        %464 = vmatpush1.xpose.msra.mxu0 0.0
        %465 = vmatprep.subr.mxu0 0.0
        %466 = vmatpush1.xpose.msra.mxu0 0.0
        %467 = vmatprep.subr.mxu0 0.0
        %468 = vmatpush1.xpose.msra.mxu0 0.0
        %469 = vmatprep.subr.mxu0 0.0
        %470 = vmatpush1.xpose.msra.mxu0 0.0
        %471 = vmatprep.subr.mxu0 0.0
        %472 = vmatpush1.xpose.msra.mxu0 0.0
        %473 = vmatprep.subr.mxu0 0.0
        %474 = vmatpush1.xpose.msra.mxu0 0.0
        %475 = vmatprep.subr.mxu0 0.0
        %476 = vmatpush1.xpose.msra.mxu0 0.0
        %477 = vmatprep.subr.mxu0 0.0
        %478 = vmatpush1.xpose.msra.mxu0 0.0
        %479 = vmatprep.subr.mxu0 0.0
        %480 = vmatpush1.xpose.msra.mxu0 0.0
        %481 = vmatprep.subr.mxu0 0.0
        %482 = vmatpush1.xpose.msra.mxu0 %v403
        %483 = vmatprep.subr.mxu0 0.0
        %484 = vmatpush1.xpose.msra.mxu0 %v402
        %485 = vmatprep.subr.mxu0 0.0
        %486 = vmatpush2.xpose.msra.mxu0 0.0
        %487 = vmatprep.subr.mxu0 0.0
        %488 = vmatpush2.xpose.msra.mxu0 0.0
        %489 = vmatprep.subr.mxu0 0.0
        %490 = vmatpush2.xpose.msra.mxu0 0.0
        %491 = vmatprep.subr.mxu0 0.0
        %492 = vmatpush2.xpose.msra.mxu0 0.0
        %493 = vmatprep.subr.mxu0 0.0
        %494 = vmatpush2.xpose.msra.mxu0 0.0
        %495 = vmatprep.subr.mxu0 0.0
        %496 = vmatpush2.xpose.msra.mxu0 0.0
        %497 = vmatprep.subr.mxu0 0.0
        %498 = vmatpush2.xpose.msra.mxu0 0.0
        %499 = vmatprep.subr.mxu0 0.0
        %500 = vmatpush2.xpose.msra.mxu0 0.0
        %501 = vmatprep.subr.mxu0 0.0
        %502 = vmatpush2.xpose.msra.mxu0 0.0
        %503 = vmatprep.subr.mxu0 0.0
        %504 = vmatpush2.xpose.msra.mxu0 0.0
        %505 = vmatprep.subr.mxu0 0.0
        %506 = vmatpush2.xpose.msra.mxu0 0.0
        %507 = vmatprep.subr.mxu0 0.0
        %508 = vmatpush2.xpose.msra.mxu0 0.0
        %509 = vmatprep.subr.mxu0 0.0
        %510 = vmatpush2.xpose.msra.mxu0 0.0
        %511 = vmatprep.subr.mxu0 0.0
        %512 = vmatpush2.xpose.msra.mxu0 0.0
        %513 = vmatprep.subr.mxu0 0.0
        %514 = vmatpush2.xpose.msra.mxu0 0.0
        %515 = vmatprep.subr.mxu0 0.0
        %516 = vmatpush2.xpose.msra.mxu0 0.0
        %517 = vmatprep.mubr.f32.mxu0 0.0
        %518 = vmatmul.mubr.f32.gmra.mxu0 %v449
        %v519 = vpop.f32.mrf.mxu0
        %v520 = vadd.f32 0.0, %v519
        %v521 = vpop.f32.mrf.mxu0
        %522 = vdwg.mxu0
        %v523 = vmul.f32 %v520, 2.0
        %v524 = vsub.f32 %v452, %v523
        %v525 = vmul.f32 %v524, 0.088388346
        %vm526 = vcmask 130048
        %v527 = vsel %vm526, %v525, -inf
        %v528 = vrot.slane %v527, 4
        %v529 = vmax.f32 %v527, %v528
        %v530 = vrot.slane %v529, 2
        %v531 = vmax.f32 %v529, %v530
        %v532 = vrot.slane %v531, 1
        %v533 = vmax.f32 %v531, %v532
        %v534 = vsub.f32 %v525, %v533
        %v535 = vmul.f32 %v534, 1.442695
        %v536 = vpow.pop %v535
        %v537 = vsel %vm526, %v536, 0.0
        %v538 = vrot.slane %v537, 4
        %v539 = vadd.f32 %v537, %v538
        %v540 = vrot.slane %v539, 2
        %v541 = vadd.f32 %v539, %v540
        %v542 = vrot.slane %v541, 1
        %v543 = vadd.f32 %v541, %v542
        %v544 = vrcp.pop %v543
        %v545 = vmul.f32 %v536, %v544
        %v546 = vadd.f32 %v545, 1e-08
        %v547 = vsel %vm526, %v546, 0.0
        %548 = vadd.xlane.f32.xlu0 %v547
        %v549 = vpop.xlane.xlu0 %548
        %v550 = vrcp.pop %v549
        %v551 = vmul.f32 %v546, %v550
        %v553 = vsel %vm526, %v551, 0
        %555 = vmatprep.subr.mxu0 0.0
        %556 = vmatpush1.msra.mxu0 0.0
        %557 = vmatprep.subr.mxu0 0.0
        %558 = vmatpush1.msra.mxu0 0.0
        %559 = vmatprep.subr.mxu0 0.0
        %560 = vmatpush1.msra.mxu0 0.0
        %561 = vmatprep.subr.mxu0 0.0
        %562 = vmatpush1.msra.mxu0 0.0
        %563 = vmatprep.subr.mxu0 0.0
        %564 = vmatpush1.msra.mxu0 0.0
        %565 = vmatprep.subr.mxu0 0.0
        %566 = vmatpush1.msra.mxu0 0.0
        %567 = vmatprep.subr.mxu0 0.0
        %568 = vmatpush1.msra.mxu0 0.0
        %569 = vmatprep.subr.mxu0 0.0
        %570 = vmatpush1.msra.mxu0 0.0
        %571 = vmatprep.subr.mxu0 0.0
        %572 = vmatpush1.msra.mxu0 0.0
        %573 = vmatprep.subr.mxu0 0.0
        %574 = vmatpush1.msra.mxu0 0.0
        %575 = vmatprep.subr.mxu0 0.0
        %576 = vmatpush1.msra.mxu0 0.0
        %577 = vmatprep.subr.mxu0 0.0
        %578 = vmatpush1.msra.mxu0 0.0
        %579 = vmatprep.subr.mxu0 0.0
        %580 = vmatpush1.msra.mxu0 0.0
        %581 = vmatprep.subr.mxu0 0.0
        %582 = vmatpush1.msra.mxu0 0.0
        %583 = vmatprep.subr.mxu0 0.0
        %584 = vmatpush1.msra.mxu0 %v403
        %585 = vmatprep.subr.mxu0 0.0
        %586 = vmatpush1.msra.mxu0 %v402
        %587 = vmatprep.subr.mxu0 0.0
        %588 = vmatpush2.msra.mxu0 0.0
        %589 = vmatprep.subr.mxu0 0.0
        %590 = vmatpush2.msra.mxu0 0.0
        %591 = vmatprep.subr.mxu0 0.0
        %592 = vmatpush2.msra.mxu0 0.0
        %593 = vmatprep.subr.mxu0 0.0
        %594 = vmatpush2.msra.mxu0 0.0
        %595 = vmatprep.subr.mxu0 0.0
        %596 = vmatpush2.msra.mxu0 0.0
        %597 = vmatprep.subr.mxu0 0.0
        %598 = vmatpush2.msra.mxu0 0.0
        %599 = vmatprep.subr.mxu0 0.0
        %600 = vmatpush2.msra.mxu0 0.0
        %601 = vmatprep.subr.mxu0 0.0
        %602 = vmatpush2.msra.mxu0 0.0
        %603 = vmatprep.subr.mxu0 0.0
        %604 = vmatpush2.msra.mxu0 0.0
        %605 = vmatprep.subr.mxu0 0.0
        %606 = vmatpush2.msra.mxu0 0.0
        %607 = vmatprep.subr.mxu0 0.0
        %608 = vmatpush2.msra.mxu0 0.0
        %609 = vmatprep.subr.mxu0 0.0
        %610 = vmatpush2.msra.mxu0 0.0
        %611 = vmatprep.subr.mxu0 0.0
        %612 = vmatpush2.msra.mxu0 0.0
        %613 = vmatprep.subr.mxu0 0.0
        %614 = vmatpush2.msra.mxu0 0.0
        %615 = vmatprep.subr.mxu0 0.0
        %616 = vmatpush2.msra.mxu0 0.0
        %617 = vmatprep.subr.mxu0 0.0
        %618 = vmatpush2.msra.mxu0 0.0
        %619 = vmatprep.mubr.f32.mxu0 0.0
        %620 = vmatmul.mubr.f32.gmra.mxu0 %v553
        %v621 = vpop.f32.mrf.mxu0
        %v622 = vadd.f32 0.0, %v621
        %v623 = vpop.f32.mrf.mxu0
        %624 = vdwg.mxu0
        %625 = vadd.xlane.f32.xlu0 %v622
        %v626 = vpop.xlane.xlu0 %625
        %v627 = vmul.f32 %v626, %v369
        %v628 = vsub.f32 %v622, %v627
        %v629 = vmul.f32 %v628, %v628
        %630 = vadd.xlane.f32.xlu0 %v629
        %v631 = vpop.xlane.xlu0 %630
        %v632 = vmul.f32 %v631, %v369
        %v633 = vadd.f32 %v632, 1e-05
        %v634 = vrsqrt.pop %v633
        %v635 = vmul.f32 %v628, %v634
        %v636 = vmul.f32 %v635, %v440
        %v637 = vadd.f32 %v636, %v447
        %v638 = vmul.f32 %v637, %v637
        %639 = vadd.xlane.f32.xlu0 %v638
        %v640 = vpop.xlane.xlu0 %639
        %641 = vmatprep.subr.mxu0 0.0
        %642 = vmatpush1.xpose.msra.mxu0 0.0
        %643 = vmatprep.subr.mxu0 0.0
        %644 = vmatpush1.xpose.msra.mxu0 0.0
        %645 = vmatprep.subr.mxu0 0.0
        %646 = vmatpush1.xpose.msra.mxu0 0.0
        %647 = vmatprep.subr.mxu0 0.0
        %648 = vmatpush1.xpose.msra.mxu0 0.0
        %649 = vmatprep.subr.mxu0 0.0
        %650 = vmatpush1.xpose.msra.mxu0 0.0
        %651 = vmatprep.subr.mxu0 0.0
        %652 = vmatpush1.xpose.msra.mxu0 0.0
        %653 = vmatprep.subr.mxu0 0.0
        %654 = vmatpush1.xpose.msra.mxu0 0.0
        %655 = vmatprep.subr.mxu0 0.0
        %656 = vmatpush1.xpose.msra.mxu0 0.0
        %657 = vmatprep.subr.mxu0 0.0
        %658 = vmatpush1.xpose.msra.mxu0 0.0
        %659 = vmatprep.subr.mxu0 0.0
        %660 = vmatpush1.xpose.msra.mxu0 0.0
        %661 = vmatprep.subr.mxu0 0.0
        %662 = vmatpush1.xpose.msra.mxu0 0.0
        %663 = vmatprep.subr.mxu0 0.0
        %664 = vmatpush1.xpose.msra.mxu0 0.0
        %665 = vmatprep.subr.mxu0 0.0
        %666 = vmatpush1.xpose.msra.mxu0 0.0
        %667 = vmatprep.subr.mxu0 0.0
        %668 = vmatpush1.xpose.msra.mxu0 0.0
        %669 = vmatprep.subr.mxu0 0.0
        %670 = vmatpush1.xpose.msra.mxu0 %v403
        %671 = vmatprep.subr.mxu0 0.0
        %672 = vmatpush1.xpose.msra.mxu0 %v402
        %673 = vmatprep.subr.mxu0 0.0
        %674 = vmatpush2.xpose.msra.mxu0 0.0
        %675 = vmatprep.subr.mxu0 0.0
        %676 = vmatpush2.xpose.msra.mxu0 0.0
        %677 = vmatprep.subr.mxu0 0.0
        %678 = vmatpush2.xpose.msra.mxu0 0.0
        %679 = vmatprep.subr.mxu0 0.0
        %680 = vmatpush2.xpose.msra.mxu0 0.0
        %681 = vmatprep.subr.mxu0 0.0
        %682 = vmatpush2.xpose.msra.mxu0 0.0
        %683 = vmatprep.subr.mxu0 0.0
        %684 = vmatpush2.xpose.msra.mxu0 0.0
        %685 = vmatprep.subr.mxu0 0.0
        %686 = vmatpush2.xpose.msra.mxu0 0.0
        %687 = vmatprep.subr.mxu0 0.0
        %688 = vmatpush2.xpose.msra.mxu0 0.0
        %689 = vmatprep.subr.mxu0 0.0
        %690 = vmatpush2.xpose.msra.mxu0 0.0
        %691 = vmatprep.subr.mxu0 0.0
        %692 = vmatpush2.xpose.msra.mxu0 0.0
        %693 = vmatprep.subr.mxu0 0.0
        %694 = vmatpush2.xpose.msra.mxu0 0.0
        %695 = vmatprep.subr.mxu0 0.0
        %696 = vmatpush2.xpose.msra.mxu0 0.0
        %697 = vmatprep.subr.mxu0 0.0
        %698 = vmatpush2.xpose.msra.mxu0 0.0
        %699 = vmatprep.subr.mxu0 0.0
        %700 = vmatpush2.xpose.msra.mxu0 0.0
        %701 = vmatprep.subr.mxu0 0.0
        %702 = vmatpush2.xpose.msra.mxu0 0.0
        %703 = vmatprep.subr.mxu0 0.0
        %704 = vmatpush2.xpose.msra.mxu0 0.0
        %705 = vmatprep.mubr.f32.mxu0 0.0
        %706 = vmatmul.mubr.f32.gmra.mxu0 %v637
        %v707 = vpop.f32.mrf.mxu0
        %v708 = vadd.f32 0.0, %v707
        %v709 = vpop.f32.mrf.mxu0
        %710 = vdwg.mxu0
        %v711 = vmul.f32 %v708, 2.0
        %v712 = vsub.f32 %v640, %v711
        %v713 = vmul.f32 %v712, 0.088388346
        %v714 = vsel %vm526, %v713, -inf
        %v715 = vrot.slane %v714, 4
        %v716 = vmax.f32 %v714, %v715
        %v717 = vrot.slane %v716, 2
        %v718 = vmax.f32 %v716, %v717
        %v719 = vrot.slane %v718, 1
        %v720 = vmax.f32 %v718, %v719
        %v721 = vsub.f32 %v713, %v720
        %v722 = vmul.f32 %v721, 1.442695
        %v723 = vpow.pop %v722
        %v724 = vsel %vm526, %v723, 0.0
        %v725 = vrot.slane %v724, 4
        %v726 = vadd.f32 %v724, %v725
        %v727 = vrot.slane %v726, 2
        %v728 = vadd.f32 %v726, %v727
        %v729 = vrot.slane %v728, 1
        %v730 = vadd.f32 %v728, %v729
        %v731 = vrcp.pop %v730
        %v732 = vmul.f32 %v723, %v731
        %v733 = vadd.f32 %v732, 1e-08
        %v734 = vsel %vm526, %v733, 0.0
        %735 = vadd.xlane.f32.xlu0 %v734
        %v736 = vpop.xlane.xlu0 %735
        %v737 = vrcp.pop %v736
        %v738 = vmul.f32 %v733, %v737
        %v740 = vsel %vm526, %v738, 0
        %742 = vmatprep.subr.mxu0 0.0
        %743 = vmatpush1.msra.mxu0 0.0
        %744 = vmatprep.subr.mxu0 0.0
        %745 = vmatpush1.msra.mxu0 0.0
        %746 = vmatprep.subr.mxu0 0.0
        %747 = vmatpush1.msra.mxu0 0.0
        %748 = vmatprep.subr.mxu0 0.0
        %749 = vmatpush1.msra.mxu0 0.0
        %750 = vmatprep.subr.mxu0 0.0
        %751 = vmatpush1.msra.mxu0 0.0
        %752 = vmatprep.subr.mxu0 0.0
        %753 = vmatpush1.msra.mxu0 0.0
        %754 = vmatprep.subr.mxu0 0.0
        %755 = vmatpush1.msra.mxu0 0.0
        %756 = vmatprep.subr.mxu0 0.0
        %757 = vmatpush1.msra.mxu0 0.0
        %758 = vmatprep.subr.mxu0 0.0
        %759 = vmatpush1.msra.mxu0 0.0
        %760 = vmatprep.subr.mxu0 0.0
        %761 = vmatpush1.msra.mxu0 0.0
        %762 = vmatprep.subr.mxu0 0.0
        %763 = vmatpush1.msra.mxu0 0.0
        %764 = vmatprep.subr.mxu0 0.0
        %765 = vmatpush1.msra.mxu0 0.0
        %766 = vmatprep.subr.mxu0 0.0
        %767 = vmatpush1.msra.mxu0 0.0
        %768 = vmatprep.subr.mxu0 0.0
        %769 = vmatpush1.msra.mxu0 0.0
        %770 = vmatprep.subr.mxu0 0.0
        %771 = vmatpush1.msra.mxu0 %v403
        %772 = vmatprep.subr.mxu0 0.0
        %773 = vmatpush1.msra.mxu0 %v402
        %774 = vmatprep.subr.mxu0 0.0
        %775 = vmatpush2.msra.mxu0 0.0
        %776 = vmatprep.subr.mxu0 0.0
        %777 = vmatpush2.msra.mxu0 0.0
        %778 = vmatprep.subr.mxu0 0.0
        %779 = vmatpush2.msra.mxu0 0.0
        %780 = vmatprep.subr.mxu0 0.0
        %781 = vmatpush2.msra.mxu0 0.0
        %782 = vmatprep.subr.mxu0 0.0
        %783 = vmatpush2.msra.mxu0 0.0
        %784 = vmatprep.subr.mxu0 0.0
        %785 = vmatpush2.msra.mxu0 0.0
        %786 = vmatprep.subr.mxu0 0.0
        %787 = vmatpush2.msra.mxu0 0.0
        %788 = vmatprep.subr.mxu0 0.0
        %789 = vmatpush2.msra.mxu0 0.0
        %790 = vmatprep.subr.mxu0 0.0
        %791 = vmatpush2.msra.mxu0 0.0
        %792 = vmatprep.subr.mxu0 0.0
        %793 = vmatpush2.msra.mxu0 0.0
        %794 = vmatprep.subr.mxu0 0.0
        %795 = vmatpush2.msra.mxu0 0.0
        %796 = vmatprep.subr.mxu0 0.0
        %797 = vmatpush2.msra.mxu0 0.0
        %798 = vmatprep.subr.mxu0 0.0
        %799 = vmatpush2.msra.mxu0 0.0
        %800 = vmatprep.subr.mxu0 0.0
        %801 = vmatpush2.msra.mxu0 0.0
        %802 = vmatprep.subr.mxu0 0.0
        %803 = vmatpush2.msra.mxu0 0.0
        %804 = vmatprep.subr.mxu0 0.0
        %805 = vmatpush2.msra.mxu0 0.0
        %806 = vmatprep.mubr.f32.mxu0 0.0
        %807 = vmatmul.mubr.f32.gmra.mxu0 %v740
        %v808 = vpop.f32.mrf.mxu0
        %v809 = vadd.f32 0.0, %v808
        %v810 = vpop.f32.mrf.mxu0
        %811 = vdwg.mxu0
        %812 = vadd.xlane.f32.xlu0 %v809
        %v813 = vpop.xlane.xlu0 %812
        %v814 = vmul.f32 %v813, %v369
        %v815 = vsub.f32 %v809, %v814
        %v816 = vmul.f32 %v815, %v815
        %817 = vadd.xlane.f32.xlu0 %v816
        %v818 = vpop.xlane.xlu0 %817
        %v819 = vmul.f32 %v818, %v369
        %v820 = vadd.f32 %v819, 1e-05
        %v821 = vrsqrt.pop %v820
        %v822 = vmul.f32 %v815, %v821
        %v823 = vmul.f32 %v822, %v440
        %v824 = vadd.f32 %v823, %v447
        %v825 = vmul.f32 %v824, %v824
        %826 = vadd.xlane.f32.xlu0 %v825
        %v827 = vpop.xlane.xlu0 %826
        %828 = vmatprep.subr.mxu0 0.0
        %829 = vmatpush1.xpose.msra.mxu0 0.0
        %830 = vmatprep.subr.mxu0 0.0
        %831 = vmatpush1.xpose.msra.mxu0 0.0
        %832 = vmatprep.subr.mxu0 0.0
        %833 = vmatpush1.xpose.msra.mxu0 0.0
        %834 = vmatprep.subr.mxu0 0.0
        %835 = vmatpush1.xpose.msra.mxu0 0.0
        %836 = vmatprep.subr.mxu0 0.0
        %837 = vmatpush1.xpose.msra.mxu0 0.0
        %838 = vmatprep.subr.mxu0 0.0
        %839 = vmatpush1.xpose.msra.mxu0 0.0
        %840 = vmatprep.subr.mxu0 0.0
        %841 = vmatpush1.xpose.msra.mxu0 0.0
        %842 = vmatprep.subr.mxu0 0.0
        %843 = vmatpush1.xpose.msra.mxu0 0.0
        %844 = vmatprep.subr.mxu0 0.0
        %845 = vmatpush1.xpose.msra.mxu0 0.0
        %846 = vmatprep.subr.mxu0 0.0
        %847 = vmatpush1.xpose.msra.mxu0 0.0
        %848 = vmatprep.subr.mxu0 0.0
        %849 = vmatpush1.xpose.msra.mxu0 0.0
        %850 = vmatprep.subr.mxu0 0.0
        %851 = vmatpush1.xpose.msra.mxu0 0.0
        %852 = vmatprep.subr.mxu0 0.0
        %853 = vmatpush1.xpose.msra.mxu0 0.0
        %854 = vmatprep.subr.mxu0 0.0
        %855 = vmatpush1.xpose.msra.mxu0 0.0
        %856 = vmatprep.subr.mxu0 0.0
        %857 = vmatpush1.xpose.msra.mxu0 %v403
        %858 = vmatprep.subr.mxu0 0.0
        %859 = vmatpush1.xpose.msra.mxu0 %v402
        %860 = vmatprep.subr.mxu0 0.0
        %861 = vmatpush2.xpose.msra.mxu0 0.0
        %862 = vmatprep.subr.mxu0 0.0
        %863 = vmatpush2.xpose.msra.mxu0 0.0
        %864 = vmatprep.subr.mxu0 0.0
        %865 = vmatpush2.xpose.msra.mxu0 0.0
        %866 = vmatprep.subr.mxu0 0.0
        %867 = vmatpush2.xpose.msra.mxu0 0.0
        %868 = vmatprep.subr.mxu0 0.0
        %869 = vmatpush2.xpose.msra.mxu0 0.0
        %870 = vmatprep.subr.mxu0 0.0
        %871 = vmatpush2.xpose.msra.mxu0 0.0
        %872 = vmatprep.subr.mxu0 0.0
        %873 = vmatpush2.xpose.msra.mxu0 0.0
        %874 = vmatprep.subr.mxu0 0.0
        %875 = vmatpush2.xpose.msra.mxu0 0.0
        %876 = vmatprep.subr.mxu0 0.0
        %877 = vmatpush2.xpose.msra.mxu0 0.0
        %878 = vmatprep.subr.mxu0 0.0
        %879 = vmatpush2.xpose.msra.mxu0 0.0
        %880 = vmatprep.subr.mxu0 0.0
        %881 = vmatpush2.xpose.msra.mxu0 0.0
        %882 = vmatprep.subr.mxu0 0.0
        %883 = vmatpush2.xpose.msra.mxu0 0.0
        %884 = vmatprep.subr.mxu0 0.0
        %885 = vmatpush2.xpose.msra.mxu0 0.0
        %886 = vmatprep.subr.mxu0 0.0
        %887 = vmatpush2.xpose.msra.mxu0 0.0
        %888 = vmatprep.subr.mxu0 0.0
        %889 = vmatpush2.xpose.msra.mxu0 0.0
        %890 = vmatprep.subr.mxu0 0.0
        %891 = vmatpush2.xpose.msra.mxu0 0.0
        %892 = vmatprep.mubr.f32.mxu0 0.0
        %893 = vmatmul.mubr.f32.gmra.mxu0 %v824
        %v894 = vpop.f32.mrf.mxu0
        %v895 = vadd.f32 0.0, %v894
        %v896 = vpop.f32.mrf.mxu0
        %897 = vdwg.mxu0
        %v898 = vmul.f32 %v895, 2.0
        %v899 = vsub.f32 %v827, %v898
        %v900 = vmul.f32 %v899, 0.088388346
        %v901 = vsel %vm526, %v900, -inf
        %v902 = vrot.slane %v901, 4
        %v903 = vmax.f32 %v901, %v902
        %v904 = vrot.slane %v903, 2
        %v905 = vmax.f32 %v903, %v904
        %v906 = vrot.slane %v905, 1
        %v907 = vmax.f32 %v905, %v906
        %v908 = vsub.f32 %v900, %v907
        %v909 = vmul.f32 %v908, 1.442695
        %v910 = vpow.pop %v909
        %v911 = vsel %vm526, %v910, 0.0
        %v912 = vrot.slane %v911, 4
        %v913 = vadd.f32 %v911, %v912
        %v914 = vrot.slane %v913, 2
        %v915 = vadd.f32 %v913, %v914
        %v916 = vrot.slane %v915, 1
        %v917 = vadd.f32 %v915, %v916
        %v918 = vrcp.pop %v917
        %v919 = vmul.f32 %v910, %v918
        %v920 = vadd.f32 %v919, 1e-08
        %v921 = vsel %vm526, %v920, 0.0
        %922 = vadd.xlane.f32.xlu0 %v921
        %v923 = vpop.xlane.xlu0 %922
        %v924 = vrcp.pop %v923
        %v925 = vmul.f32 %v920, %v924
        %v927 = vsel %vm526, %v925, 0
        %929 = vmatprep.subr.mxu0 0.0
        %930 = vmatpush1.msra.mxu0 0.0
        %931 = vmatprep.subr.mxu0 0.0
        %932 = vmatpush1.msra.mxu0 0.0
        %933 = vmatprep.subr.mxu0 0.0
        %934 = vmatpush1.msra.mxu0 0.0
        %935 = vmatprep.subr.mxu0 0.0
        %936 = vmatpush1.msra.mxu0 0.0
        %937 = vmatprep.subr.mxu0 0.0
        %938 = vmatpush1.msra.mxu0 0.0
        %939 = vmatprep.subr.mxu0 0.0
        %940 = vmatpush1.msra.mxu0 0.0
        %941 = vmatprep.subr.mxu0 0.0
        %942 = vmatpush1.msra.mxu0 0.0
        %943 = vmatprep.subr.mxu0 0.0
        %944 = vmatpush1.msra.mxu0 0.0
        %945 = vmatprep.subr.mxu0 0.0
        %946 = vmatpush1.msra.mxu0 0.0
        %947 = vmatprep.subr.mxu0 0.0
        %948 = vmatpush1.msra.mxu0 0.0
        %949 = vmatprep.subr.mxu0 0.0
        %950 = vmatpush1.msra.mxu0 0.0
        %951 = vmatprep.subr.mxu0 0.0
        %952 = vmatpush1.msra.mxu0 0.0
        %953 = vmatprep.subr.mxu0 0.0
        %954 = vmatpush1.msra.mxu0 0.0
        %955 = vmatprep.subr.mxu0 0.0
        %956 = vmatpush1.msra.mxu0 0.0
        %957 = vmatprep.subr.mxu0 0.0
        %958 = vmatpush1.msra.mxu0 %v403
        %959 = vmatprep.subr.mxu0 0.0
        %960 = vmatpush1.msra.mxu0 %v402
        %961 = vmatprep.subr.mxu0 0.0
        %962 = vmatpush2.msra.mxu0 0.0
        %963 = vmatprep.subr.mxu0 0.0
        %964 = vmatpush2.msra.mxu0 0.0
        %965 = vmatprep.subr.mxu0 0.0
        %966 = vmatpush2.msra.mxu0 0.0
        %967 = vmatprep.subr.mxu0 0.0
        %968 = vmatpush2.msra.mxu0 0.0
        %969 = vmatprep.subr.mxu0 0.0
        %970 = vmatpush2.msra.mxu0 0.0
        %971 = vmatprep.subr.mxu0 0.0
        %972 = vmatpush2.msra.mxu0 0.0
        %973 = vmatprep.subr.mxu0 0.0
        %974 = vmatpush2.msra.mxu0 0.0
        %975 = vmatprep.subr.mxu0 0.0
        %976 = vmatpush2.msra.mxu0 0.0
        %977 = vmatprep.subr.mxu0 0.0
        %978 = vmatpush2.msra.mxu0 0.0
        %979 = vmatprep.subr.mxu0 0.0
        %980 = vmatpush2.msra.mxu0 0.0
        %981 = vmatprep.subr.mxu0 0.0
        %982 = vmatpush2.msra.mxu0 0.0
        %983 = vmatprep.subr.mxu0 0.0
        %984 = vmatpush2.msra.mxu0 0.0
        %985 = vmatprep.subr.mxu0 0.0
        %986 = vmatpush2.msra.mxu0 0.0
        %987 = vmatprep.subr.mxu0 0.0
        %988 = vmatpush2.msra.mxu0 0.0
        %989 = vmatprep.subr.mxu0 0.0
        %990 = vmatpush2.msra.mxu0 0.0
        %991 = vmatprep.subr.mxu0 0.0
        %992 = vmatpush2.msra.mxu0 0.0
        %993 = vmatprep.mubr.f32.mxu0 0.0
        %994 = vmatmul.mubr.f32.gmra.mxu0 %v927
        %v995 = vpop.f32.mrf.mxu0
        %v996 = vadd.f32 0.0, %v995
        %v997 = vpop.f32.mrf.mxu0
        %998 = vdwg.mxu0
        %999 = vst [vmem:[%s360] sm:$0xff] %v996
        %s1000 = sand.u32 %s214, 1
        %s1001 = scalar_lea.sflag [#allocation4], %s1000
        %s1002 = sand.u32 %s214, 1
        %s1003 = smul.addr %s1002, 8
        %s1004 = scalar_lea.vmem [#allocation7], %s1003
        // Predicated region
        $region61: #{tpu_custom_call.1} parent=51 // pred_check
          %p1005 = pneg %p224
        $region62: #{tpu_custom_call.1} parent=51 // pred_check_branch
          %1007 = sbr.rel (%p1005) target = $region64
        $region63: #{tpu_custom_call.1} parent=51 // pred_region
          %s1009 = ssub.s32 128, 128
          %1010 = vsyncadd %s1001, %s1009
          %s1011 = smul.addr %s28, 128
          %s1012 = scalar_lea.hbm %s8, %s1011
          %s1014 = sshll.u32 %s1004, 4
          %s1015 = int_to_ptr.vmem [resolvable:$true] %s1014
          %1017 = dma.vmem_to_hbm [thread:$0]  %s1015, 128, %s1012, %s1001
        $region64: #{tpu_custom_call.1} parent=51 // pred_fallthru
          _
      $region52: #{tpu_custom_call.1} parent=5 // pred_fallthru
        _
      %p1018 = scmp.le.s32.totalorder 2, %s23
      // Predicated region
      $region65: #{tpu_custom_call.1} parent=5 // pred_check
        %p1019 = pneg %p1018
      $region66: #{tpu_custom_call.1} parent=5 // pred_check_branch
        %1021 = sbr.rel (%p1019) target = $region68
      $region67: #{tpu_custom_call.1} parent=5 // pred_region
        %s1022 = ssub.s32 %s23, 2
        // Predicated region
        $region69: #{tpu_custom_call.1} parent=67 // pred_check
          %p1023 = pneg %p230
        $region70: #{tpu_custom_call.1} parent=67 // pred_check_branch
          %1025 = sbr.rel (%p1023) target = $region72
        $region71: #{tpu_custom_call.1} parent=67 // pred_region
          %s1026 = sand.u32 %s215, 1
          %s1027 = scalar_lea.sflag [#allocation4], %s1026
          %s1028 = sand.u32 %s215, 1
          %s1029 = smul.addr %s1028, 8
          %s1030 = scalar_lea.vmem [#allocation7], %s1029
          %1031 = dma.done %s1027, 128
        $region72: #{tpu_custom_call.1} parent=67 // pred_fallthru
          _
      $region68: #{tpu_custom_call.1} parent=5 // pred_fallthru
        _
    $region6: #{tpu_custom_call.1} parent=1 // loop_footer
      %s27 = sadd.s32 1, %s23
    $region7: #{tpu_custom_call.1} parent=1 // loop_footer_branch
      %22 = sbr.rel target = $region3
    $region8: #{tpu_custom_call.1} parent=1 // loop_exit
      _
    %1032 = vsyncpa [#allocation3], 1
    %s1033 = scalar_lea.sflag [#allocation3], 1
    %1034 = vsyncpa %s1033, 1
    %1035 = vsyncpa [#allocation6], 1
    %s1036 = scalar_lea.sflag [#allocation6], 1
    %1037 = vsyncpa %s1036, 1
    %1038 = vsyncpa [#allocation4], 1
    %s1039 = scalar_lea.sflag [#allocation4], 1
    %1040 = vsyncpa %s1039, 1

</llo_original>
